<compile_context>
chip_gen: v5e
topology: v5e:2x2
jax: 0.10.0
libtpu: 0.0.40
codegen_flags: <defaults>
</compile_context>

<pallas_src>
import functools
import math

import jax
import jax.numpy as jnp
from jax.experimental import pallas as pl
from jax.experimental.pallas import tpu as pltpu

_LANE = 128      # lane width (last dim)
_SUBLANE = 8     # sublane width (second-to-last dim)


def _round_up(x, m):
    return ((x + m - 1) // m) * m


def _choose_tm(b_pad, cap=256):
    """Batch tile: multiple of 8, divides b_pad, prefers >=2 (even) grid steps."""
    cap = min(cap, b_pad)
    candidates = [c for c in range(_SUBLANE, cap + 1, _SUBLANE) if b_pad % c == 0]
    if not candidates:
        return b_pad
    for c in reversed(candidates):            # largest tile with an even #steps >= 2
        steps = b_pad // c
        if steps >= 2 and steps % 2 == 0:
            return c
    for c in reversed(candidates):            # else any tile with >= 2 steps
        if b_pad // c >= 2:
            return c
    return candidates[-1]                     # single-step grid (tiny batch)


def _fused_mlp_kernel(*refs, n_layers):
    """h = x; per layer: acc_f32 = h_bf16 @ Wt_bf16 (multiplier pre-folded);
    tanh(acc) -> bf16 between hidden layers; single f32 store of the last acc."""
    x_ref = refs[0]
    w_refs = refs[1:1 + n_layers]
    o_ref = refs[1 + n_layers]

    h = x_ref[...]                                           # bf16
    acc = None
    for i in range(n_layers):
        acc = jnp.dot(h, w_refs[i][...], preferred_element_type=jnp.float32)
        if i < n_layers - 1:
            h = jnp.tanh(acc).astype(jnp.bfloat16)           # EUP; bf16 into next MXU pass
    o_ref[...] = acc.astype(o_ref.dtype)


def init_mlp_params(key, dims):
    """nn.Linear(bias=False)-style init: U(-1/sqrt(fan_in), 1/sqrt(fan_in)).
    Returns PyTorch-layout weights (out_features, in_features), f32."""
    params = []
    for i in range(len(dims) - 1):
        key, sub = jax.random.split(key)
        bound = 1.0 / math.sqrt(dims[i])
        w = jax.random.uniform(
            sub, (dims[i + 1], dims[i]), dtype=jnp.float32,
            minval=-bound, maxval=bound)
        params.append(w)
    return params


def prepare_mlp_params(weights, layer_multipliers=None, dtype=jnp.bfloat16):
    """One-time prep (at init, NOT per forward):
       * fold the per-layer multiplier into the weight (in f32, then cast),
       * transpose PyTorch (out, in) -> (in, out) so the kernel computes x @ W_t,
       * zero-pad ONLY the final output dim up to a multiple of 128 (lane-dense
         unmasked store; zero columns are exact),
       * cast to bf16 for MXU-native operands / halved DMA.
    Returns (prepared_weights, logical_dims, padded_out_dim)."""
    n_layers = len(weights)
    if layer_multipliers is None:
        layer_multipliers = [1.0] * n_layers
    dims = [weights[0].shape[1]] + [w.shape[0] for w in weights]
    pad_out = _round_up(dims[-1], _LANE)

    prepared = []
    for i, w in enumerate(weights):
        w_t = (w.astype(jnp.float32) * jnp.float32(layer_multipliers[i])).T   # (in, out)
        if i == n_layers - 1:
            w_t = jnp.pad(w_t, ((0, 0), (0, pad_out - dims[-1])))
        prepared.append(w_t.astype(dtype))
    return prepared, dims, pad_out


def mlp_forward(x, prepared):
    """Fused Pallas MLP forward.  x: (B, dims[0]) float32, returns float32."""
    w_preps, dims, pad_out = prepared
    n_layers = len(w_preps)
    B, d_in = x.shape
    assert d_in == dims[0], (d_in, dims[0])

    # Pad batch to a sublane multiple; cast input to bf16 (MXU operand dtype).
    b_pad = _round_up(B, _SUBLANE)
    x_p = jnp.pad(x, ((0, b_pad - B), (0, 0))).astype(w_preps[0].dtype)

    tm = _choose_tm(b_pad)
    grid = (b_pad // tm,)

    in_specs = [pl.BlockSpec((tm, d_in), lambda i: (i, 0))]
    for w in w_preps:
        # Whole weight resident in VMEM; constant index_map => no point in
        # double-buffering, so request a single buffer.
        in_specs.append(
            pl.BlockSpec(tuple(w.shape), lambda i: (0, 0),
                         pipeline_mode=pl.Buffered(1)))
    out_specs = pl.BlockSpec((tm, pad_out), lambda i: (i, 0))

    # Scheduling hint for XLA.
    flops = sum(2 * b_pad * dims[i] * dims[i + 1] for i in range(n_layers))
    transcendentals = sum(b_pad * dims[i + 1] for i in range(n_layers - 1))
    bytes_accessed = (2 * x_p.size
                      + 2 * sum(int(w.size) for w in w_preps)
                      + 4 * b_pad * pad_out)

    # VMEM budget (corrected accounting):
    #   single-buffered bf16 weights + double-buffered bf16 x tile
    #   + double-buffered f32 out tile + live f32 acc / bf16 h activations.
    max_feat = max(dims + [pad_out])
    bytes_w = 2 * sum(int(w.size) for w in w_preps)
    bytes_x = 2 * (2 * tm * d_in)
    bytes_o = 2 * (4 * tm * pad_out)
    bytes_act = tm * max_feat * (4 + 2)
    vmem_needed = bytes_w + bytes_x + bytes_o + bytes_act
    vmem_ceiling = 96 << 20                      # ~physical on v5e/v6e; tiny MLPs never near it
    if vmem_needed > vmem_ceiling:
        # TODO(synk): fall back to a K/N-tiled matmul kernel for huge layers.
        raise ValueError(
            f"fused MLP weights/activations need ~{vmem_needed >> 20} MiB VMEM; "
            "use a tiled-per-layer kernel instead")
    vmem_limit = int(min(max(2 * vmem_needed, 8 << 20), vmem_ceiling))

    # Tiny batches are weight-fetch bound: splitting the batch axis across the
    # two v7x TensorCores would double weight HBM traffic for no gain, so only
    # mark it "parallel" when there is real compute to share.
    semantics = ("parallel",) if b_pad > 4 * _SUBLANE else ("arbitrary",)

    kernel = functools.partial(_fused_mlp_kernel, n_layers=n_layers)
    out_pad = pl.pallas_call(
        kernel,
        out_shape=jax.ShapeDtypeStruct((b_pad, pad_out), jnp.float32),
        grid=grid,
        in_specs=in_specs,
        out_specs=out_specs,
        compiler_params=pltpu.CompilerParams(
            dimension_semantics=semantics,
            vmem_limit_bytes=vmem_limit,
        ),
        cost_estimate=pl.CostEstimate(
            flops=flops,
            transcendentals=transcendentals,
            bytes_accessed=bytes_accessed,
        ),
    )(x_p, *w_preps)

    # Strip batch / lane padding.
    return out_pad[:B, :dims[-1]]


def mlp_reference(x, weights, layer_multipliers=None):
    """Pure-JAX f32 reference with PyTorch semantics (unscaled (out,in) weights)."""
    n_layers = len(weights)
    if layer_multipliers is None:
        layer_multipliers = [1.0] * n_layers
    for i, w in enumerate(weights):
        x = x @ w.T
        x = x * layer_multipliers[i]
        if i < n_layers - 1:
            x = jnp.tanh(x)
    return x


if __name__ == "__main__":
    key = jax.random.PRNGKey(0)
    dims = [16, 32, 32, 8]               # MLP([16, 32, 32, 8], bias=False)
    batch = 16                           # small, but gives a 2-step batch grid
    layer_multipliers = [1.0, 0.5, 2.0]  # exercise the fold-into-weights path

    k_x, k_w = jax.random.split(key)
    x = jax.random.normal(k_x, (batch, dims[0]), dtype=jnp.float32)
    weights = init_mlp_params(k_w, dims)

    prepared = prepare_mlp_params(weights, layer_multipliers)

    out = mlp_forward(x, prepared)
    out = jax.block_until_ready(out)

    ref = mlp_reference(x, weights, layer_multipliers)
    assert out.shape == (batch, dims[-1]), out.shape
    # bf16 MXU operands => looser tolerance vs. the f32 reference.
    assert jnp.allclose(out, ref, atol=5e-2, rtol=5e-2), (
        float(jnp.max(jnp.abs(out - ref))))

    print("KERNEL_OK")
</pallas_src>

<mosaic_0001>
module attributes {stable_mosaic.version = 11 : i64} {
  func.func @_fused_mlp_kernel(%arg0: i32, %arg1: memref<8x16xbf16, #tpu.memory_space<vmem>>, %arg2: memref<16x32xbf16, #tpu.memory_space<vmem>>, %arg3: memref<32x32xbf16, #tpu.memory_space<vmem>>, %arg4: memref<32x128xbf16, #tpu.memory_space<vmem>>, %arg5: memref<8x128xf32, #tpu.memory_space<vmem>>) attributes {dimension_semantics = [#tpu.dimension_semantics<arbitrary>], iteration_bounds = array<i64: 2>, scalar_prefetch = 0 : i64, scratch_operands = 0 : i64, tpu.core_type = #tpu.core_type<tc>, window_params = [{transform_indices = @transform_0, window_bounds = array<i64: 8, 16>}, {pipeline_mode = #tpu.pipeline_mode<synchronous>, transform_indices = @transform_1, window_bounds = array<i64: 16, 32>}, {pipeline_mode = #tpu.pipeline_mode<synchronous>, transform_indices = @transform_2, window_bounds = array<i64: 32, 32>}, {pipeline_mode = #tpu.pipeline_mode<synchronous>, transform_indices = @transform_3, window_bounds = array<i64: 32, 128>}, {transform_indices = @transform_4, window_bounds = array<i64: 8, 128>}]} {
    %c0 = arith.constant 0 : index
    %c0_0 = arith.constant 0 : index
    %0 = vector.load %arg1[%c0, %c0_0] : memref<8x16xbf16, #tpu.memory_space<vmem>>, vector<8x16xbf16>
    %c0_1 = arith.constant 0 : index
    %c0_2 = arith.constant 0 : index
    %1 = vector.load %arg2[%c0_1, %c0_2] : memref<16x32xbf16, #tpu.memory_space<vmem>>, vector<16x32xbf16>
    %cst = arith.constant dense<0.000000e+00> : vector<8x32xf32>
    %2 = tpu.matmul %0, %1, %cst {dimension_numbers = #tpu.dot_dimension_numbers<[1], [0], [0], [1], [0, 0, 1, 1], [], []>} : vector<8x16xbf16>, vector<16x32xbf16>, vector<8x32xf32> -> vector<8x32xf32>
    %3 = math.tanh %2 : vector<8x32xf32>
    %4 = arith.truncf %3 : vector<8x32xf32> to vector<8x32xbf16>
    %c0_3 = arith.constant 0 : index
    %c0_4 = arith.constant 0 : index
    %5 = vector.load %arg3[%c0_3, %c0_4] : memref<32x32xbf16, #tpu.memory_space<vmem>>, vector<32x32xbf16>
    %cst_5 = arith.constant dense<0.000000e+00> : vector<8x32xf32>
    %6 = tpu.matmul %4, %5, %cst_5 {dimension_numbers = #tpu.dot_dimension_numbers<[1], [0], [0], [1], [0, 0, 1, 1], [], []>} : vector<8x32xbf16>, vector<32x32xbf16>, vector<8x32xf32> -> vector<8x32xf32>
    %7 = math.tanh %6 : vector<8x32xf32>
    %8 = arith.truncf %7 : vector<8x32xf32> to vector<8x32xbf16>
    %c0_6 = arith.constant 0 : index
    %c0_7 = arith.constant 0 : index
    %9 = vector.load %arg4[%c0_6, %c0_7] : memref<32x128xbf16, #tpu.memory_space<vmem>>, vector<32x128xbf16>
    %cst_8 = arith.constant dense<0.000000e+00> : vector<8x128xf32>
    %10 = tpu.matmul %8, %9, %cst_8 {dimension_numbers = #tpu.dot_dimension_numbers<[1], [0], [0], [1], [0, 0, 1, 1], [], []>} : vector<8x32xbf16>, vector<32x128xbf16>, vector<8x128xf32> -> vector<8x128xf32>
    %c0_9 = arith.constant 0 : index
    %c0_10 = arith.constant 0 : index
    %11 = vector.load %arg5[%c0_9, %c0_10] : memref<8x128xf32, #tpu.memory_space<vmem>>, vector<8x128xf32>
    tpu.vector_store %arg5[%c0_9, %c0_10], %10 {strides = array<i32>} : memref<8x128xf32, #tpu.memory_space<vmem>>, vector<8x128xf32>,
    return
  }
  func.func @transform_0(%arg0: i32) -> (i32, i32) {
    %c0_i32 = arith.constant 0 : i32
    %c0_i32_0 = arith.constant 0 : i32
    return %arg0, %c0_i32 : i32, i32
  }
  func.func @transform_1(%arg0: i32) -> (i32, i32) {
    %c0_i32 = arith.constant 0 : i32
    %c0_i32_0 = arith.constant 0 : i32
    %c0_i32_1 = arith.constant 0 : i32
    return %c0_i32, %c0_i32_0 : i32, i32
  }
  func.func @transform_2(%arg0: i32) -> (i32, i32) {
    %c0_i32 = arith.constant 0 : i32
    %c0_i32_0 = arith.constant 0 : i32
    %c0_i32_1 = arith.constant 0 : i32
    return %c0_i32, %c0_i32_0 : i32, i32
  }
  func.func @transform_3(%arg0: i32) -> (i32, i32) {
    %c0_i32 = arith.constant 0 : i32
    %c0_i32_0 = arith.constant 0 : i32
    %c0_i32_1 = arith.constant 0 : i32
    return %c0_i32, %c0_i32_0 : i32, i32
  }
  func.func @transform_4(%arg0: i32) -> (i32, i32) {
    %c0_i32 = arith.constant 0 : i32
    %c0_i32_0 = arith.constant 0 : i32
    return %arg0, %c0_i32 : i32, i32
  }
}

</mosaic_0001>

<llo_original>
// kernel: tpu_custom_call.1
$region0: #{tpu_custom_call.1}
  #allocation0 [shape = 'u32[]', space=smem, size = 0x4, offset = 0x4, fixed_abs, tag = 'smem constant byte address 0x4 - core index']
  #allocation1 [shape = 'u32[72,128]{1,0:T(1,128)}', space=vmem, size = 0x9000, scoped, tag = 'internal scratch']
  %s0 = inlined_call_operand.hbm [shape: bf16[16,16], index: 0, kind: input, shape index: {}]
  %s1 = inlined_call_operand.hbm [shape: bf16[16,32], index: 1, kind: input, shape index: {}]
  %s2 = inlined_call_operand.hbm [shape: bf16[32,32], index: 2, kind: input, shape index: {}]
  %s3 = inlined_call_operand.hbm [shape: bf16[32,128], index: 3, kind: input, shape index: {}]
  %s4 = inlined_call_operand.hbm [shape: f32[16,128], index: 4, kind: output, shape index: {}]
  %s5 = sld [smem:[#allocation0]]
  $region65: #{tpu_custom_call.1} parent=0
    _
  %s7 = ssub.s32 1, %s5
  %s8 = scalar_select 0, %s7, %s5
  $region1: #{tpu_custom_call.1} parent=0
    #allocation2 [shape = 'u8[4096]{0}', space=vmem, size = 0x1000, scoped, tag = 'input window, operand 0']
    #allocation3 [shape = 's32[2]{0}', space=sflag, size = 0x8, scoped, tag = 'scoped memory for tpu_custom_call.1']
    #allocation4 [shape = 's32[2]{0}', space=sflag, size = 0x8, scoped, tag = 'scoped memory for tpu_custom_call.1']
    #allocation5 [shape = 'u8[4096]{0}', space=vmem, size = 0x1000, scoped, tag = 'input window, operand 1, single buffered']
    #allocation6 [shape = 's32[1]{0}', space=sflag, size = 0x4, scoped, tag = 'scoped memory for tpu_custom_call.1']
    #allocation7 [shape = 'u8[8192]{0}', space=vmem, size = 0x2000, scoped, tag = 'input window, operand 2, single buffered']
    #allocation8 [shape = 'u8[8192]{0}', space=vmem, size = 0x2000, scoped, tag = 'input window, operand 3, single buffered']
    #allocation9 [shape = 's32[1]{0}', space=sflag, size = 0x4, scoped, tag = 'scoped memory for tpu_custom_call.1']
    #allocation10 [shape = 'u8[8192]{0}', space=vmem, size = 0x2000, scoped, tag = 'output window, operand 0']
    %9 = vsyncpa [#allocation3], 0
    %s10 = scalar_lea.sflag [#allocation3], 1
    %11 = vsyncpa %s10, 0
    %12 = vsyncpa [#allocation6], 0
    %13 = vsyncpa [#allocation9], 0
    %14 = vsyncpa [#allocation4], 0
    %s15 = scalar_lea.sflag [#allocation4], 1
    %16 = vsyncpa %s15, 0
    loop: start=0, step=1, limit=4
    $region2: #{tpu_custom_call.1} parent=1 // loop_pre_header
      _
    $region3: #{tpu_custom_call.1} parent=1 // loop_header
      %s18 = sphi 0, %s22
      %p19 = scmp.ge.s32.totalorder %s18, 4
      %s28 = sphi 0, %s30
      %s31 = sphi 0, %s28
      %s32 = sphi 0, %s31
      %s48 = sphi 0, %s32
      %s52 = sphi 0, %s52
      %s54 = sphi 0, %s52
      %s55 = sphi 0, %s54
      %s69 = sphi 0, %s55
      %s73 = sphi 0, %s73
      %s75 = sphi 0, %s73
      %s76 = sphi 0, %s75
      %s90 = sphi 0, %s76
      %s94 = sphi 0, %s94
      %s96 = sphi 0, %s94
      %s97 = sphi 0, %s96
      %s111 = sphi 0, %s97
      %s117 = sphi 0, %s119
      %s120 = sphi 0, %s117
      %s121 = sphi 0, %s120
      %s137 = sphi 0, %s121
    $region4: #{tpu_custom_call.1} parent=1 // loop_header_branch
      %21 = sbr.rel (%p19) target = $region8
    $region5: #{tpu_custom_call.1} parent=1 // loop_body
      %s23 = ssub.s32 %s18, 1
      %s24 = ssub.s32 %s18, 2
      %s25 = sadd.s32 %s18, 1
      %s26 = ssub.s32 %s18, %s25
      %p27 = scmp.eq.s32.totalorder %s26, 0
      %s29 = sadd.s32 %s28, 1
      %s30 = scalar_select %p27, %s28, %s29
      %p33 = pneg %p27
      %p34 = scmp.eq.s32.totalorder %s18, 1
      %p35 = por %p33, %p34
      %p36 = scmp.ne.s32.totalorder %s28, %s31
      %p37 = scmp.eq.s32.totalorder %s18, 0
      %p38 = por %p36, %p37
      %p39 = scmp.ne.s32.totalorder %s28, %s31
      %p40 = scmp.eq.s32.totalorder %s23, 1
      %p41 = por %p39, %p40
      %p42 = scmp.ne.s32.totalorder %s31, %s32
      %p43 = scmp.eq.s32.totalorder %s23, 0
      %p44 = por %p42, %p43
      %p45 = scmp.ne.s32.totalorder %s31, %s32
      %p46 = scmp.eq.s32.totalorder %s24, 1
      %p47 = por %p45, %p46
      %p49 = scmp.ne.s32.totalorder %s32, %s48
      %p50 = scmp.eq.s32.totalorder %s24, 0
      %p51 = por %p49, %p50
      %s53 = sadd.s32 %s52, 1
      %p56 = scmp.eq.s32.totalorder %s18, 1
      %p57 = scmp.ne.s32.totalorder %s52, %s54
      %p58 = scmp.eq.s32.totalorder %s18, 0
      %p59 = por %p57, %p58
      %p60 = scmp.ne.s32.totalorder %s52, %s54
      %p61 = scmp.eq.s32.totalorder %s23, 1
      %p62 = por %p60, %p61
      %p63 = scmp.ne.s32.totalorder %s54, %s55
      %p64 = scmp.eq.s32.totalorder %s23, 0
      %p65 = por %p63, %p64
      %p66 = scmp.ne.s32.totalorder %s54, %s55
      %p67 = scmp.eq.s32.totalorder %s24, 1
      %p68 = por %p66, %p67
      %p70 = scmp.ne.s32.totalorder %s55, %s69
      %p71 = scmp.eq.s32.totalorder %s24, 0
      %p72 = por %p70, %p71
      %s74 = sadd.s32 %s73, 1
      %p77 = scmp.eq.s32.totalorder %s18, 1
      %p78 = scmp.ne.s32.totalorder %s73, %s75
      %p79 = scmp.eq.s32.totalorder %s18, 0
      %p80 = por %p78, %p79
      %p81 = scmp.ne.s32.totalorder %s73, %s75
      %p82 = scmp.eq.s32.totalorder %s23, 1
      %p83 = por %p81, %p82
      %p84 = scmp.ne.s32.totalorder %s75, %s76
      %p85 = scmp.eq.s32.totalorder %s23, 0
      %p86 = por %p84, %p85
      %p87 = scmp.ne.s32.totalorder %s75, %s76
      %p88 = scmp.eq.s32.totalorder %s24, 1
      %p89 = por %p87, %p88
      %p91 = scmp.ne.s32.totalorder %s76, %s90
      %p92 = scmp.eq.s32.totalorder %s24, 0
      %p93 = por %p91, %p92
      %s95 = sadd.s32 %s94, 1
      %p98 = scmp.eq.s32.totalorder %s18, 1
      %p99 = scmp.ne.s32.totalorder %s94, %s96
      %p100 = scmp.eq.s32.totalorder %s18, 0
      %p101 = por %p99, %p100
      %p102 = scmp.ne.s32.totalorder %s94, %s96
      %p103 = scmp.eq.s32.totalorder %s23, 1
      %p104 = por %p102, %p103
      %p105 = scmp.ne.s32.totalorder %s96, %s97
      %p106 = scmp.eq.s32.totalorder %s23, 0
      %p107 = por %p105, %p106
      %p108 = scmp.ne.s32.totalorder %s96, %s97
      %p109 = scmp.eq.s32.totalorder %s24, 1
      %p110 = por %p108, %p109
      %p112 = scmp.ne.s32.totalorder %s97, %s111
      %p113 = scmp.eq.s32.totalorder %s24, 0
      %p114 = por %p112, %p113
      %s115 = ssub.s32 %s18, %s25
      %p116 = scmp.eq.s32.totalorder %s115, 0
      %s118 = sadd.s32 %s117, 1
      %s119 = scalar_select %p116, %s117, %s118
      %p122 = pneg %p116
      %p123 = scmp.eq.s32.totalorder %s18, 1
      %p124 = por %p122, %p123
      %p125 = scmp.ne.s32.totalorder %s117, %s120
      %p126 = scmp.eq.s32.totalorder %s18, 0
      %p127 = por %p125, %p126
      %p128 = scmp.ne.s32.totalorder %s117, %s120
      %p129 = scmp.eq.s32.totalorder %s23, 1
      %p130 = por %p128, %p129
      %p131 = scmp.ne.s32.totalorder %s120, %s121
      %p132 = scmp.eq.s32.totalorder %s23, 0
      %p133 = por %p131, %p132
      %p134 = scmp.ne.s32.totalorder %s120, %s121
      %p135 = scmp.eq.s32.totalorder %s24, 1
      %p136 = por %p134, %p135
      %p138 = scmp.ne.s32.totalorder %s121, %s137
      %p139 = scmp.eq.s32.totalorder %s24, 0
      %p140 = por %p138, %p139
      %p141 = scmp.le.s32.totalorder 1, %s18
      %p142 = scmp.lt.s32.totalorder %s18, 3
      %p143 = pnand %p141, %p142
      %p144 = pneg %p143
      // Predicated region
      $region9: #{tpu_custom_call.1} parent=5 // pred_check
        _
      $region10: #{tpu_custom_call.1} parent=5 // pred_check_branch
        %146 = sbr.rel (%p143) target = $region12
      $region11: #{tpu_custom_call.1} parent=5 // pred_region
        %s147 = ssub.s32 %s18, 1
        // Predicated region
        $region13: #{tpu_custom_call.1} parent=11 // pred_check
          %p148 = pneg %p65
        $region14: #{tpu_custom_call.1} parent=11 // pred_check_branch
          %150 = sbr.rel (%p148) target = $region16
        $region15: #{tpu_custom_call.1} parent=11 // pred_region
          %152 = vsyncadd [#allocation6], 0
          %s153 = sshll.u32 %s1, 4
          %s154 = int_to_ptr.hbm [resolvable:$true] %s153
          %s155 = sshll.u32 [#allocation5], 4
          %s156 = int_to_ptr.vmem [resolvable:$true] %s155
          %161 = dma.hbm_to_vmem [thread:$0]  %s154, 128, %s156, [#allocation6], 64, 64, 4
        $region16: #{tpu_custom_call.1} parent=11 // pred_fallthru
          _
        // Predicated region
        $region17: #{tpu_custom_call.1} parent=11 // pred_check
          %p162 = pneg %p86
        $region18: #{tpu_custom_call.1} parent=11 // pred_check_branch
          %164 = sbr.rel (%p162) target = $region20
        $region19: #{tpu_custom_call.1} parent=11 // pred_region
          %166 = vsyncadd [#allocation6], 0
          %s167 = sshll.u32 %s2, 4
          %s168 = int_to_ptr.hbm [resolvable:$true] %s167
          %s169 = sshll.u32 [#allocation7], 4
          %s170 = int_to_ptr.vmem [resolvable:$true] %s169
          %175 = dma.hbm_to_vmem [thread:$0]  %s168, 256, %s170, [#allocation6], 64, 64, 4
        $region20: #{tpu_custom_call.1} parent=11 // pred_fallthru
          _
        // Predicated region
        $region21: #{tpu_custom_call.1} parent=11 // pred_check
          %p176 = pneg %p107
        $region22: #{tpu_custom_call.1} parent=11 // pred_check_branch
          %178 = sbr.rel (%p176) target = $region24
        $region23: #{tpu_custom_call.1} parent=11 // pred_region
          %180 = vsyncadd [#allocation9], 0
          %s181 = sshll.u32 %s3, 4
          %s182 = int_to_ptr.hbm [resolvable:$true] %s181
          %s183 = sshll.u32 [#allocation8], 4
          %s184 = int_to_ptr.vmem [resolvable:$true] %s183
          %189 = dma.hbm_to_vmem [thread:$0]  %s182, 256, %s184, [#allocation9], 64, 64, 4
        $region24: #{tpu_custom_call.1} parent=11 // pred_fallthru
          _
      $region12: #{tpu_custom_call.1} parent=5 // pred_fallthru
        _
      %p190 = scmp.lt.s32.totalorder %s18, 2
      // Predicated region
      $region25: #{tpu_custom_call.1} parent=5 // pred_check
        %p191 = pneg %p190
      $region26: #{tpu_custom_call.1} parent=5 // pred_check_branch
        %193 = sbr.rel (%p191) target = $region28
      $region27: #{tpu_custom_call.1} parent=5 // pred_region
        // Predicated region
        $region29: #{tpu_custom_call.1} parent=27 // pred_check
          %p194 = pneg %p38
        $region30: #{tpu_custom_call.1} parent=27 // pred_check_branch
          %196 = sbr.rel (%p194) target = $region32
        $region31: #{tpu_custom_call.1} parent=27 // pred_region
          %s197 = sand.u32 %s28, 1
          %s198 = scalar_lea.sflag [#allocation3], %s197
          %s199 = sand.u32 %s28, 1
          %s200 = smul.addr %s199, 4
          %s201 = scalar_lea.vmem [#allocation2], %s200
          %203 = vsyncadd %s198, 0
          %s204 = smul.addr %s18, 4
          %s205 = scalar_lea.hbm %s0, %s204
          %s207 = sshll.u32 %s205, 4
          %s208 = int_to_ptr.hbm [resolvable:$true] %s207
          %s209 = sshll.u32 %s201, 4
          %s210 = int_to_ptr.vmem [resolvable:$true] %s209
          %212 = dma.hbm_to_vmem [thread:$0]  %s208, 64, %s210, %s198
        $region32: #{tpu_custom_call.1} parent=27 // pred_fallthru
          _
      $region28: #{tpu_custom_call.1} parent=5 // pred_fallthru
        _
      %p213 = scmp.le.s32.totalorder 1, %s18
      %p214 = scmp.lt.s32.totalorder %s18, 3
      %p215 = pnand %p213, %p214
      %p216 = pneg %p215
      // Predicated region
      $region33: #{tpu_custom_call.1} parent=5 // pred_check
        _
      $region34: #{tpu_custom_call.1} parent=5 // pred_check_branch
        %218 = sbr.rel (%p215) target = $region36
      $region35: #{tpu_custom_call.1} parent=5 // pred_region
        %s219 = ssub.s32 %s18, 1
        %s220 = sand.u32 %s31, 1
        %s221 = scalar_lea.sflag [#allocation3], %s220
        %s222 = sand.u32 %s31, 1
        %s223 = smul.addr %s222, 4
        %s224 = scalar_lea.vmem [#allocation2], %s223
        // Predicated region
        $region37: #{tpu_custom_call.1} parent=35 // pred_check
          %p225 = pneg %p44
        $region38: #{tpu_custom_call.1} parent=35 // pred_check_branch
          %227 = sbr.rel (%p225) target = $region40
        $region39: #{tpu_custom_call.1} parent=35 // pred_region
          %229 = dma.done %s221, 64
        $region40: #{tpu_custom_call.1} parent=35 // pred_fallthru
          _
        // Predicated region
        $region41: #{tpu_custom_call.1} parent=35 // pred_check
          %p230 = pneg %p65
        $region42: #{tpu_custom_call.1} parent=35 // pred_check_branch
          %232 = sbr.rel (%p230) target = $region44
        $region43: #{tpu_custom_call.1} parent=35 // pred_region
          %234 = dma.done [#allocation6], 128
        $region44: #{tpu_custom_call.1} parent=35 // pred_fallthru
          _
        // Predicated region
        $region45: #{tpu_custom_call.1} parent=35 // pred_check
          %p235 = pneg %p86
        $region46: #{tpu_custom_call.1} parent=35 // pred_check_branch
          %237 = sbr.rel (%p235) target = $region48
        $region47: #{tpu_custom_call.1} parent=35 // pred_region
          %239 = dma.done [#allocation6], 256
        $region48: #{tpu_custom_call.1} parent=35 // pred_fallthru
          _
        // Predicated region
        $region49: #{tpu_custom_call.1} parent=35 // pred_check
          %p240 = pneg %p107
        $region50: #{tpu_custom_call.1} parent=35 // pred_check_branch
          %242 = sbr.rel (%p240) target = $region52
        $region51: #{tpu_custom_call.1} parent=35 // pred_region
          %244 = dma.done [#allocation9], 256
        $region52: #{tpu_custom_call.1} parent=35 // pred_fallthru
          _
        %s245 = sand.u32 %s31, 1
        %s246 = scalar_lea.sflag [#allocation3], %s245
        %s247 = sand.u32 %s31, 1
        %s248 = smul.addr %s247, 4
        %s249 = scalar_lea.vmem [#allocation2], %s248
        %p250 = pneg %p44
        %p251 = pneg %p41
        %p252 = pneg %p65
        %p253 = pneg %p62
        %p254 = pneg %p86
        %p255 = pneg %p83
        %p256 = pneg %p107
        %p257 = pneg %p104
        %p258 = pneg %p133
        %p259 = pneg %p130
        %s260 = sand.u32 %s120, 1
        %s261 = scalar_lea.sflag [#allocation4], %s260
        %s262 = sand.u32 %s120, 1
        %s263 = smul.addr %s262, 8
        %s264 = scalar_lea.vmem [#allocation10], %s263
        %v266 = vld [vmem:[%s224] sm:$0xf]
        %v267 = vld [vmem:[#allocation5] sm:$0xf]
        %v268 = vld [vmem:[#allocation5 + $0x4] sm:$0xf]
        %v271 = vunpack.c.l.b16 %v267
        %v272 = vunpack.c.l.b16 %v268
        %v273 = vpack.c.b16 %v272, %v271
        %vm275 = vcmask 130048
        %v277 = vsel %vm275, %v266, 0
        %279 = vmatpush.bf16.msra.mxu0 0
        %280 = vmatpush.bf16.msra.mxu0 0
        %281 = vmatpush.bf16.msra.mxu0 0
        %282 = vmatpush.bf16.msra.mxu0 0
        %283 = vmatpush.bf16.msra.mxu0 0
        %284 = vmatpush.bf16.msra.mxu0 0
        %285 = vmatpush.bf16.msra.mxu0 0
        %286 = vmatpush.bf16.msra.mxu0 %v273
        %287 = vmatmul.bf16.gmra.mxu0 %v277
        %v288 = vpop.f32.mrf.mxu0
        %v289 = vadd.f32 0.0, %v288
        %v290 = vpop.f32.mrf.mxu0
        %291 = vdwg.mxu0
        %v292 = vtanh.pop %v289
        %v293 = vpack.c.bf16 %v292, %v292
        %v294 = vld [vmem:[#allocation7] sm:$0xf]
        %v295 = vld [vmem:[#allocation7 + $0x4] sm:$0xf]
        %v296 = vld [vmem:[#allocation7 + $0x8] sm:$0xf]
        %v297 = vld [vmem:[#allocation7 + $0xc] sm:$0xf]
        %v302 = vunpack.c.l.b16 %v294
        %v303 = vunpack.c.l.b16 %v295
        %v304 = vunpack.c.l.b16 %v296
        %v305 = vunpack.c.l.b16 %v297
        %v306 = vpack.c.b16 %v303, %v302
        %v307 = vpack.c.b16 %v305, %v304
        %vm310 = vcmask 261120
        %v312 = vsel %vm310, %v293, 0
        %314 = vmatpush.bf16.msra.mxu0 0
        %315 = vmatpush.bf16.msra.mxu0 0
        %316 = vmatpush.bf16.msra.mxu0 0
        %317 = vmatpush.bf16.msra.mxu0 0
        %318 = vmatpush.bf16.msra.mxu0 0
        %319 = vmatpush.bf16.msra.mxu0 0
        %320 = vmatpush.bf16.msra.mxu0 %v307
        %321 = vmatpush.bf16.msra.mxu0 %v306
        %322 = vmatmul.bf16.gmra.mxu0 %v312
        %v323 = vpop.f32.mrf.mxu0
        %v324 = vadd.f32 0.0, %v323
        %v325 = vpop.f32.mrf.mxu0
        %326 = vdwg.mxu0
        %v327 = vtanh.pop %v324
        %v328 = vpack.c.bf16 %v327, %v327
        %v329 = vld [vmem:[#allocation8] sm:$0xf]
        %v330 = vld [vmem:[#allocation8 + $0x4] sm:$0xf]
        %v331 = vld [vmem:[#allocation8 + $0x8] sm:$0xf]
        %v332 = vld [vmem:[#allocation8 + $0xc] sm:$0xf]
        %v337 = vunpack.c.l.b16 %v329
        %v338 = vunpack.c.l.b16 %v330
        %v339 = vunpack.c.l.b16 %v331
        %v340 = vunpack.c.l.b16 %v332
        %v341 = vpack.c.b16 %v338, %v337
        %v342 = vpack.c.b16 %v340, %v339
        %v346 = vsel %vm310, %v328, 0
        %348 = vmatpush.bf16.msra.mxu0 0
        %349 = vmatpush.bf16.msra.mxu0 0
        %350 = vmatpush.bf16.msra.mxu0 0
        %351 = vmatpush.bf16.msra.mxu0 0
        %352 = vmatpush.bf16.msra.mxu0 0
        %353 = vmatpush.bf16.msra.mxu0 0
        %354 = vmatpush.bf16.msra.mxu0 %v342
        %355 = vmatpush.bf16.msra.mxu0 %v341
        %356 = vmatmul.bf16.gmra.mxu0 %v346
        %v357 = vpop.f32.mrf.mxu0
        %v358 = vadd.f32 0.0, %v357
        %v359 = vpop.f32.mrf.mxu0
        %360 = vdwg.mxu0
        %361 = vst [vmem:[%s264] sm:$0xff] %v358
        %s362 = sand.u32 %s120, 1
        %s363 = scalar_lea.sflag [#allocation4], %s362
        %s364 = sand.u32 %s120, 1
        %s365 = smul.addr %s364, 8
        %s366 = scalar_lea.vmem [#allocation10], %s365
        // Predicated region
        $region53: #{tpu_custom_call.1} parent=35 // pred_check
          %p367 = pneg %p130
        $region54: #{tpu_custom_call.1} parent=35 // pred_check_branch
          %369 = sbr.rel (%p367) target = $region56
        $region55: #{tpu_custom_call.1} parent=35 // pred_region
          %371 = vsyncadd %s363, 0
          %s372 = smul.addr %s23, 8
          %s373 = scalar_lea.hbm %s4, %s372
          %s375 = sshll.u32 %s366, 4
          %s376 = int_to_ptr.vmem [resolvable:$true] %s375
          %s377 = sshll.u32 %s373, 4
          %s378 = int_to_ptr.hbm [resolvable:$true] %s377
          %380 = dma.vmem_to_hbm [thread:$0]  %s376, 128, %s378, %s363
        $region56: #{tpu_custom_call.1} parent=35 // pred_fallthru
          _
      $region36: #{tpu_custom_call.1} parent=5 // pred_fallthru
        _
      %p381 = scmp.le.s32.totalorder 2, %s18
      // Predicated region
      $region57: #{tpu_custom_call.1} parent=5 // pred_check
        %p382 = pneg %p381
      $region58: #{tpu_custom_call.1} parent=5 // pred_check_branch
        %384 = sbr.rel (%p382) target = $region60
      $region59: #{tpu_custom_call.1} parent=5 // pred_region
        %s385 = ssub.s32 %s18, 2
        // Predicated region
        $region61: #{tpu_custom_call.1} parent=59 // pred_check
          %p386 = pneg %p136
        $region62: #{tpu_custom_call.1} parent=59 // pred_check_branch
          %388 = sbr.rel (%p386) target = $region64
        $region63: #{tpu_custom_call.1} parent=59 // pred_region
          %s389 = sand.u32 %s121, 1
          %s390 = scalar_lea.sflag [#allocation4], %s389
          %s391 = sand.u32 %s121, 1
          %s392 = smul.addr %s391, 8
          %s393 = scalar_lea.vmem [#allocation10], %s392
          %395 = dma.done %s390, 128
        $region64: #{tpu_custom_call.1} parent=59 // pred_fallthru
          _
      $region60: #{tpu_custom_call.1} parent=5 // pred_fallthru
        _
    $region6: #{tpu_custom_call.1} parent=1 // loop_footer
      %s22 = sadd.s32 1, %s18
    $region7: #{tpu_custom_call.1} parent=1 // loop_footer_branch
      %17 = sbr.rel target = $region3
    $region8: #{tpu_custom_call.1} parent=1 // loop_exit
      _
    %396 = vsyncpa [#allocation3], 1
    %s397 = scalar_lea.sflag [#allocation3], 1
    %398 = vsyncpa %s397, 1
    %399 = vsyncpa [#allocation6], 1
    %400 = vsyncpa [#allocation9], 1
    %401 = vsyncpa [#allocation4], 1
    %s402 = scalar_lea.sflag [#allocation4], 1
    %403 = vsyncpa %s402, 1

</llo_original>
